<compile_context>
chip_gen: v7x
topology: tpu7x:2x2x1
jax: 0.10.0
libtpu: 0.0.40
codegen_flags: <defaults>
</compile_context>

<pallas_src>
import functools

import jax
import jax.numpy as jnp
from jax.experimental import pallas as pl
from jax.experimental.pallas import tpu as pltpu

_LANES = 128


def _round_up(x: int, m: int) -> int:
    return ((x + m - 1) // m) * m


def _gemv_packed_kernel(x_ref, w_ref, o_ref, *, feat: int, groups: int):
    """One grid step of the packed GEMV.

    x_ref: (bm, 128) packed rows; each packed row holds `groups` original rows
           of `feat` features laid out contiguously along lanes.
    w_ref: (1, 128) weight row tiled `groups` times (resident across steps).
    o_ref: (bm, groups); o[i, g] = dot(original row 4*i+g..., w).
    """
    x = x_ref[...].astype(jnp.float32)
    w = w_ref[...].astype(jnp.float32)
    p = x * w  # dense VPU multiply: every lane is a useful x*w product.

    # Windowed (width-`feat`) lane sums via log2(feat) roll+add doubling steps
    # (rolls ride the XLU slot).  After the doubling, lane (g+1)*feat - 1 of
    # each packed row holds the sum over lanes [g*feat, (g+1)*feat), i.e. the
    # dot product of original row g of that packed row.  Wrap-around from the
    # circular roll only touches lanes we never read.
    s = p
    shift = 1
    while shift < feat:
        s = s + pltpu.roll(s, shift=shift, axis=1)
        shift *= 2

    for g in range(groups):  # static, small (groups = 128 // feat)
        hi = (g + 1) * feat
        o_ref[:, g:g + 1] = s[:, hi - 1:hi].astype(o_ref.dtype)


def bayes_logreg_forward_pallas(x: jnp.ndarray, w: jnp.ndarray,
                                *, tile_rows: int = 32768) -> jnp.ndarray:
    """Pallas GEMV: x (N, F) @ w (1, F).T -> (N, 1). w is the nn.Linear weight."""
    n, f = x.shape
    assert w.shape == (1, f), w.shape

    if not (8 <= f <= _LANES and _LANES % f == 0):
        # TODO(synk): packed fast path needs F | 128 (the module's typical
        # small in_features); other widths fall back to the fused XLA dot.
        return x @ w.T

    groups = _LANES // f                       # original rows per packed row
    n_main = (n // groups) * groups            # rows handled by the kernel
    if n_main == 0:
        return x @ w.T

    # Free row-major regrouping: (n_main, F) -> (n_main/groups, 128).
    x_main = x if n_main == n else x[:n_main]
    n_packed = n_main // groups
    x_packed = x_main.reshape(n_packed, _LANES)
    w_tiled = jnp.tile(w, (1, groups))         # (1, 128)

    # ---- tile sizing (packed rows) ------------------------------------
    tile_packed = max(8, tile_rows // groups)  # ~4 MiB of packed x per step
    num_steps = pl.cdiv(n_packed, tile_packed)
    if num_steps == 1 and n_packed >= 16:
        num_steps = 2                          # let v7x megacore split the batch
    bm = -(-n_packed // num_steps)             # ceil
    if bm < n_packed:
        bm = min(_round_up(bm, 8), n_packed)   # keep (8, 128) block alignment
    grid = (pl.cdiv(n_packed, bm),)            # last block may be partial

    itemsize = jnp.dtype(x.dtype).itemsize
    # x block + (lane-padded) out block, double buffered, plus the weight row.
    vmem_need = 2 * bm * _LANES * 4 + 2 * bm * _LANES * 4 + _LANES * 4
    vmem_limit = int(min(max(vmem_need + (16 << 20), 32 << 20), 56 << 20))

    out_packed = pl.pallas_call(
        functools.partial(_gemv_packed_kernel, feat=f, groups=groups),
        out_shape=jax.ShapeDtypeStruct((n_packed, groups), x.dtype),
        grid_spec=pl.GridSpec(
            grid=grid,
            in_specs=[
                # x: streamed lane-dense (bm, 128) blocks, double-buffered.
                pl.BlockSpec((bm, _LANES), lambda i: (i, 0)),
                # w: same block every step -> resident in VMEM.
                pl.BlockSpec((1, _LANES), lambda i: (0, 0)),
            ],
            out_specs=pl.BlockSpec((bm, groups), lambda i: (i, 0)),
        ),
        compiler_params=pltpu.CompilerParams(
            dimension_semantics=("parallel",),   # independent batch tiles
            vmem_limit_bytes=vmem_limit,
        ),
        cost_estimate=pl.CostEstimate(
            flops=2 * n_main * f,
            transcendentals=0,
            bytes_accessed=(x_packed.size + w_tiled.size) * itemsize
            + n_main * itemsize,
        ),
    )(x_packed, w_tiled)

    out_main = out_packed.reshape(n_main, 1)   # free contiguous view back to (N, 1)
    if n_main == n:
        return out_main
    # Ragged tail (< groups rows): tiny XLA dot, avoids any full-array pad.
    tail = x[n_main:] @ w.T
    return jnp.concatenate([out_main, tail], axis=0)


def bayes_logreg_forward(x: jnp.ndarray, w: jnp.ndarray,
                         *, min_bytes_for_pallas: int = 4 << 20,
                         tile_rows: int = 32768) -> jnp.ndarray:
    """forward() of BayesLogisticRegressionHMC: x @ w.T (no bias, no sigmoid)."""
    if x.size * jnp.dtype(x.dtype).itemsize < min_bytes_for_pallas:
        # Small batches: launch + per-step overhead dwarf the work; XLA's
        # fused dot already hits roofline there.
        return x @ w.T
    return bayes_logreg_forward_pallas(x, w, tile_rows=tile_rows)


if __name__ == "__main__":
    key = jax.random.PRNGKey(0)
    k_x, k_w, k_big = jax.random.split(key, 3)

    in_features = 32

    # nn.Linear(in_features, 1, bias=False) weight: shape (1, F), kaiming-
    # uniform-style bound 1/sqrt(F).  Deterministic synthetic params.
    bound = 1.0 / (in_features ** 0.5)
    w = jax.random.uniform(k_w, (1, in_features), minval=-bound, maxval=bound,
                           dtype=jnp.float32)

    # Small shape consistent with the module's toy usage.
    x_small = jax.random.normal(k_x, (8, in_features), dtype=jnp.float32)
    # A batch big enough to exercise the tiled / pipelined multi-step grid.
    x_big = jax.random.normal(k_big, (2048, in_features), dtype=jnp.float32)

    # Exercise the Pallas kernel directly at both sizes.
    out_small = jax.block_until_ready(bayes_logreg_forward_pallas(x_small, w))
    out_big = jax.block_until_ready(bayes_logreg_forward_pallas(x_big, w))
    # And the dispatching wrapper (falls back to the XLA dot below threshold).
    out_disp = jax.block_until_ready(bayes_logreg_forward(x_small, w))

    def ref(xv):
        # Element-wise f32 reference (avoids MXU default-precision wiggle).
        return jnp.sum(xv * w, axis=-1, keepdims=True)

    assert out_small.shape == (8, 1)
    assert out_big.shape == (2048, 1)
    assert jnp.allclose(out_small, ref(x_small), atol=1e-5, rtol=1e-5)
    assert jnp.allclose(out_big, ref(x_big), atol=1e-5, rtol=1e-5)
    assert jnp.allclose(out_disp, ref(x_small), atol=1e-5, rtol=1e-5)

    print("KERNEL_OK")
</pallas_src>

<mosaic_0001>
module attributes {stable_mosaic.version = 11 : i64} {
  func.func @_gemv_packed_kernel(%arg0: i32, %arg1: memref<2x128xf32, #tpu.memory_space<vmem>>, %arg2: memref<1x128xf32, #tpu.memory_space<vmem>>, %arg3: memref<2x4xf32, #tpu.memory_space<vmem>>) attributes {dimension_semantics = [#tpu.dimension_semantics<parallel>], iteration_bounds = array<i64: 1>, scalar_prefetch = 0 : i64, scratch_operands = 0 : i64, tpu.core_type = #tpu.core_type<tc>, window_params = [{transform_indices = @transform_0, window_bounds = array<i64: 2, 128>}, {pipeline_mode = #tpu.pipeline_mode<synchronous>, transform_indices = @transform_1, window_bounds = array<i64: 1, 128>}, {transform_indices = @transform_2, window_bounds = array<i64: 2, 4>}]} {
    %c0 = arith.constant 0 : index
    %c0_0 = arith.constant 0 : index
    %0 = vector.load %arg1[%c0, %c0_0] : memref<2x128xf32, #tpu.memory_space<vmem>>, vector<2x128xf32>
    %c0_1 = arith.constant 0 : index
    %c0_2 = arith.constant 0 : index
    %1 = vector.load %arg2[%c0_1, %c0_2] : memref<1x128xf32, #tpu.memory_space<vmem>>, vector<1x128xf32>
    %2 = vector.broadcast %1 : vector<1x128xf32> to vector<2x128xf32>
    %3 = arith.mulf %0, %2 : vector<2x128xf32>
    %c1_i32 = arith.constant 1 : i32
    %4 = tpu.dynamic_rotate %3 by %c1_i32 dim 1 : vector<2x128xf32>, i32 -> vector<2x128xf32>
    %5 = arith.addf %3, %4 : vector<2x128xf32>
    %c2_i32 = arith.constant 2 : i32
    %6 = tpu.dynamic_rotate %5 by %c2_i32 dim 1 : vector<2x128xf32>, i32 -> vector<2x128xf32>
    %7 = arith.addf %5, %6 : vector<2x128xf32>
    %c4_i32 = arith.constant 4 : i32
    %8 = tpu.dynamic_rotate %7 by %c4_i32 dim 1 : vector<2x128xf32>, i32 -> vector<2x128xf32>
    %9 = arith.addf %7, %8 : vector<2x128xf32>
    %c8_i32 = arith.constant 8 : i32
    %10 = tpu.dynamic_rotate %9 by %c8_i32 dim 1 : vector<2x128xf32>, i32 -> vector<2x128xf32>
    %11 = arith.addf %9, %10 : vector<2x128xf32>
    %c16_i32 = arith.constant 16 : i32
    %12 = tpu.dynamic_rotate %11 by %c16_i32 dim 1 : vector<2x128xf32>, i32 -> vector<2x128xf32>
    %13 = arith.addf %11, %12 : vector<2x128xf32>
    %14 = vector.extract_strided_slice %13 {offsets = [0, 31], sizes = [2, 1], strides = [1, 1]} : vector<2x128xf32> to vector<2x1xf32>
    %c0_3 = arith.constant 0 : index
    %c0_4 = arith.constant 0 : index
    %15 = vector.load %arg3[%c0_3, %c0_4] : memref<2x4xf32, #tpu.memory_space<vmem>>, vector<2x1xf32>
    tpu.vector_store %arg3[%c0_3, %c0_4], %14 {strides = array<i32>} : memref<2x4xf32, #tpu.memory_space<vmem>>, vector<2x1xf32>,
    %16 = vector.extract_strided_slice %13 {offsets = [0, 63], sizes = [2, 1], strides = [1, 1]} : vector<2x128xf32> to vector<2x1xf32>
    %c0_5 = arith.constant 0 : index
    %c1 = arith.constant 1 : index
    %17 = vector.load %arg3[%c0_5, %c1] : memref<2x4xf32, #tpu.memory_space<vmem>>, vector<2x1xf32>
    tpu.vector_store %arg3[%c0_5, %c1], %16 {strides = array<i32>} : memref<2x4xf32, #tpu.memory_space<vmem>>, vector<2x1xf32>,
    %18 = vector.extract_strided_slice %13 {offsets = [0, 95], sizes = [2, 1], strides = [1, 1]} : vector<2x128xf32> to vector<2x1xf32>
    %c0_6 = arith.constant 0 : index
    %c2 = arith.constant 2 : index
    %19 = vector.load %arg3[%c0_6, %c2] : memref<2x4xf32, #tpu.memory_space<vmem>>, vector<2x1xf32>
    tpu.vector_store %arg3[%c0_6, %c2], %18 {strides = array<i32>} : memref<2x4xf32, #tpu.memory_space<vmem>>, vector<2x1xf32>,
    %20 = vector.extract_strided_slice %13 {offsets = [0, 127], sizes = [2, 1], strides = [1, 1]} : vector<2x128xf32> to vector<2x1xf32>
    %c0_7 = arith.constant 0 : index
    %c3 = arith.constant 3 : index
    %21 = vector.load %arg3[%c0_7, %c3] : memref<2x4xf32, #tpu.memory_space<vmem>>, vector<2x1xf32>
    tpu.vector_store %arg3[%c0_7, %c3], %20 {strides = array<i32>} : memref<2x4xf32, #tpu.memory_space<vmem>>, vector<2x1xf32>,
    return
  }
  func.func @transform_0(%arg0: i32) -> (i32, i32) {
    %c0_i32 = arith.constant 0 : i32
    %c0_i32_0 = arith.constant 0 : i32
    return %arg0, %c0_i32 : i32, i32
  }
  func.func @transform_1(%arg0: i32) -> (i32, i32) {
    %c0_i32 = arith.constant 0 : i32
    %c0_i32_0 = arith.constant 0 : i32
    %c0_i32_1 = arith.constant 0 : i32
    return %c0_i32, %c0_i32_0 : i32, i32
  }
  func.func @transform_2(%arg0: i32) -> (i32, i32) {
    %c0_i32 = arith.constant 0 : i32
    %c0_i32_0 = arith.constant 0 : i32
    return %arg0, %c0_i32 : i32, i32
  }
}

</mosaic_0001>

<llo_original>
// kernel: tpu_custom_call.1
$region0: #{tpu_custom_call.1}
  #allocation0 [shape = 'u32[]', space=smem, size = 0x4, offset = 0x4, fixed_abs, tag = 'smem constant byte address 0x4 - core index']
  #allocation1 [shape = 'u32[144,128]{1,0:T(1,128)}', space=vmem, size = 0x12000, scoped, tag = 'internal scratch']
  %s0 = inlined_call_operand.hbm [shape: f32[2,128], index: 0, kind: input, shape index: {}]
  %s1 = inlined_call_operand.vmem [shape: f32[1,128], index: 1, kind: input, shape index: {}]
  %s2 = inlined_call_operand.hbm [shape: f32[2,4], index: 2, kind: output, shape index: {}]
  %s3 = sld [smem:[#allocation0]]
  $region22: #{tpu_custom_call.1} parent=0
    _
  %s5 = ssub.s32 1, %s3
  %s6 = scalar_select 0, %s5, %s3
  $region1: #{tpu_custom_call.1} parent=0
    #allocation2 [shape = 'u8[1024]{0}', space=vmem, size = 0x400, scoped, tag = 'input window, operand 0, single buffered']
    #allocation3 [shape = 's32[1]{0}', space=sflag, size = 0x4, scoped, tag = 'scoped memory for tpu_custom_call.1']
    #allocation4 [shape = 's32[1]{0}', space=sflag, size = 0x4, scoped, tag = 'scoped memory for tpu_custom_call.1']
    #allocation5 [shape = 'u8[1024]{0}', space=vmem, size = 0x400, scoped, tag = 'output window, operand 0, single buffered']
    %7 = vsyncpa [#allocation3], 0
    %8 = vsyncpa [#allocation4], 0
    // Predicated region
    $region2: #{tpu_custom_call.1} parent=1 // pred_check
      _
    $region3: #{tpu_custom_call.1} parent=1 // pred_check_branch
      %10 = sbr.rel (0) target = $region5
    $region4: #{tpu_custom_call.1} parent=1 // pred_region
      %s12 = ssub.s32 32, 32
      %13 = vsyncadd [#allocation3], %s12
      %s15 = sshll.u32 [#allocation2], 4
      %s16 = int_to_ptr.vmem [resolvable:$true] %s15
      %18 = dma.hbm_to_vmem [thread:$0]  %s0, 32, %s16, [#allocation3]
    $region5: #{tpu_custom_call.1} parent=1 // pred_fallthru
      _
    // Predicated region
    $region6: #{tpu_custom_call.1} parent=1 // pred_check
      _
    $region7: #{tpu_custom_call.1} parent=1 // pred_check_branch
      %20 = sbr.rel (0) target = $region9
    $region8: #{tpu_custom_call.1} parent=1 // pred_region
      _
    $region9: #{tpu_custom_call.1} parent=1 // pred_fallthru
      _
    // Predicated region
    $region10: #{tpu_custom_call.1} parent=1 // pred_check
      _
    $region11: #{tpu_custom_call.1} parent=1 // pred_check_branch
      %22 = sbr.rel (0) target = $region13
    $region12: #{tpu_custom_call.1} parent=1 // pred_region
      %23 = dma.done [#allocation3], 32
    $region13: #{tpu_custom_call.1} parent=1 // pred_fallthru
      _
    %v24 = vld [vmem:[#allocation2] sm:$0x3]
    %v25 = vld [vmem:[%s1] sm:$0x1]
    %v27 = vlaneseq
    %v28 = vshrl.u32 %v27, 7
    %v29 = vsub.s32 0, %v28
    %v30 = vrot.slane %v25, %v29
    %v32 = vmul.f32 %v24, %v30
    %33 = vrot.lane.b32.xlu0 %v32, 1
    %v34 = vpop.permute.xlu0 %33
    %v35 = vadd.f32 %v32, %v34
    %36 = vrot.lane.b32.xlu0 %v35, 2
    %v37 = vpop.permute.xlu0 %36
    %v38 = vadd.f32 %v35, %v37
    %39 = vrot.lane.b32.xlu0 %v38, 4
    %v40 = vpop.permute.xlu0 %39
    %v41 = vadd.f32 %v38, %v40
    %42 = vrot.lane.b32.xlu0 %v41, 8
    %v43 = vpop.permute.xlu0 %42
    %v44 = vadd.f32 %v41, %v43
    %45 = vrot.lane.b32.xlu0 %v44, 16
    %v46 = vpop.permute.xlu0 %45
    %v47 = vadd.f32 %v44, %v46
    %49 = vrot.lane.b32.xlu0 %v47, 97
    %v50 = vpop.permute.xlu0 %49
    %vm52 = vcmask 1024
    %53 = vst.msk [vmem:[#allocation5] sm:$0x3] %vm52, %v50
    %54 = vrot.lane.b32.xlu0 %v47, 66
    %v55 = vpop.permute.xlu0 %54
    %vm57 = vcmask 9224
    %58 = vst.msk [vmem:[#allocation5] sm:$0x3] %vm57, %v55
    %59 = vrot.lane.b32.xlu0 %v47, 35
    %v60 = vpop.permute.xlu0 %59
    %vm62 = vcmask 17424
    %63 = vst.msk [vmem:[#allocation5] sm:$0x3] %vm62, %v60
    %64 = vrot.lane.b32.xlu0 %v47, 4
    %v65 = vpop.permute.xlu0 %64
    %vm67 = vcmask 25624
    %68 = vst.msk [vmem:[#allocation5] sm:$0x3] %vm67, %v65
    // Predicated region
    $region14: #{tpu_custom_call.1} parent=1 // pred_check
      _
    $region15: #{tpu_custom_call.1} parent=1 // pred_check_branch
      %70 = sbr.rel (0) target = $region17
    $region16: #{tpu_custom_call.1} parent=1 // pred_region
      %s72 = ssub.s32 32, 32
      %73 = vsyncadd [#allocation4], %s72
      %s75 = sshll.u32 [#allocation5], 4
      %s76 = int_to_ptr.vmem [resolvable:$true] %s75
      %78 = dma.vmem_to_hbm [thread:$0]  %s76, 32, %s2, [#allocation4]
    $region17: #{tpu_custom_call.1} parent=1 // pred_fallthru
      _
    // Predicated region
    $region18: #{tpu_custom_call.1} parent=1 // pred_check
      _
    $region19: #{tpu_custom_call.1} parent=1 // pred_check_branch
      %80 = sbr.rel (0) target = $region21
    $region20: #{tpu_custom_call.1} parent=1 // pred_region
      %81 = dma.done [#allocation4], 32
    $region21: #{tpu_custom_call.1} parent=1 // pred_fallthru
      _
    %82 = vsyncpa [#allocation3], 1
    %83 = vsyncpa [#allocation4], 1

</llo_original>
